<compile_context>
chip_gen: v6e
topology: v6e:2x2x1
jax: 0.10.0
libtpu: 0.0.40
codegen_flags: <defaults>
</compile_context>

<pallas_src>
import functools

import jax
import jax.numpy as jnp
import numpy as np
from jax.experimental import pallas as pl
from jax.experimental.pallas import tpu as pltpu


def _upsample_reflect_matrix(t_in, t_out, pad, width, *, use_size_mode):
    """0/1 matrix S (t_in, width) s.t. x @ S == reflection_pad(upsample_nearest(x)).

    Columns beyond t_out + 2*pad (tap padding up to K_pad) are all-zero; they
    only ever contract against zero weight taps.
    """
    if use_size_mode:
        up = [(j * t_in) // t_out for j in range(t_out)]      # nn.Upsample(size=t_out, 'nearest')
    else:
        up = [j // 2 for j in range(t_out)]                   # nn.Upsample(scale_factor=2, 'nearest')
    sel = np.zeros((t_in, width), dtype=np.float32)
    for j in range(t_out + 2 * pad):
        if j < pad:
            s = pad - j                                       # ReflectionPad1d (left)
        elif j < pad + t_out:
            s = j - pad
        else:
            s = 2 * t_out - 2 + pad - j                       # ReflectionPad1d (right)
        sel[up[s], j] = 1.0
    return jnp.asarray(sel, dtype=jnp.bfloat16)               # 0/1 is exact in bf16


def _decoder_kernel(*refs, layer_cfgs, k_pad, neg_slope):
    """Fused decoder body. refs = (x, S_0..S_{L-1}, W_0..W_{L-1}, bias_pack, out)."""
    n_layers = len(layer_cfgs)
    x_ref = refs[0]
    s_refs = refs[1:1 + n_layers]
    w_refs = refs[1 + n_layers:1 + 2 * n_layers]
    b_ref = refs[1 + 2 * n_layers]
    o_ref = refs[2 + 2 * n_layers]

    h = x_ref[0]                                              # (C_in, T_in) f32, one batch row
    for i, (c_out, t_out, apply_act) in enumerate(layer_cfgs):
        # Upsample + reflection pad fused into one bf16 selection matmul (MXU).
        xp = jnp.dot(h.astype(jnp.bfloat16), s_refs[i][...],
                     preferred_element_type=jnp.float32)      # (C_in, t_out + k_pad - 1)
        # im2col: stack the k_pad lane-shifted views along sublanes.
        cols = jnp.concatenate([xp[:, k:k + t_out] for k in range(k_pad)], axis=0)
        # Single contraction-dense conv matmul, f32 accumulate.
        acc = jnp.dot(w_refs[i][...], cols.astype(jnp.bfloat16),
                      preferred_element_type=jnp.float32)     # (c_out, t_out)
        acc = acc + b_ref[0:c_out, i:i + 1]                   # f32 bias epilogue (broadcast over time)
        if apply_act:                                         # LeakyReLU(0.2)
            acc = jnp.where(acc > 0, acc, neg_slope * acc)
        # TODO(synk): Dropout(p=0.2) after layers 0/1 is identity in eval mode;
        # training-mode PRNG masking is not implemented.
        h = acc
    o_ref[0] = h.astype(o_ref.dtype)


@functools.partial(jax.jit, static_argnums=(2, 3))
def audio_decoder_forward(params, x, channels, kernel_size=7):
    """AudioDecoder forward, fully fused in one Pallas TPU kernel."""
    n, c0, t0 = x.shape
    pad = (kernel_size - 1) // 2
    n_layers = len(channels) - 1
    # Pad tap count so the im2col contraction (k_pad * C_in) is a multiple of
    # 8*C_in (128-friendly on v5e's MXU); the extra taps carry zero weights.
    k_pad = -(-kernel_size // 8) * 8

    sel_mats, w_flats, layer_cfgs = [], [], []
    t_in = t0
    for i in range(n_layers):
        w, _ = params[i]
        c_out, c_in, k = w.shape
        last = i == n_layers - 1
        t_out = 25 if last else 2 * t_in                      # final block: Upsample(size=25)
        assert t_out > pad, "ReflectionPad1d requires signal length > pad"
        width = t_out + k_pad - 1
        sel_mats.append(_upsample_reflect_matrix(t_in, t_out, pad, width,
                                                 use_size_mode=last))
        # (C_out, C_in, K) -> (C_out, K_pad, C_in) -> (C_out, K_pad*C_in), bf16.
        w_t = jnp.transpose(w, (0, 2, 1))                     # (C_out, K, C_in)
        w_t = jnp.concatenate(
            [w_t, jnp.zeros((c_out, k_pad - k, c_in), w.dtype)], axis=1)
        w_flats.append(w_t.reshape(c_out, k_pad * c_in).astype(jnp.bfloat16))
        layer_cfgs.append((c_out, t_out, not last))
        t_in = t_out

    # All layer biases packed into one small f32 input (C_out on sublanes).
    c_out_max = max(cfg[0] for cfg in layer_cfgs)
    bias_pack = jnp.zeros((c_out_max, n_layers), jnp.float32)
    for i in range(n_layers):
        bias_pack = bias_pack.at[:params[i][1].shape[0], i].set(params[i][1])

    kern = functools.partial(_decoder_kernel, layer_cfgs=tuple(layer_cfgs),
                             k_pad=k_pad, neg_slope=0.2)
    full = lambda shape: pl.BlockSpec(shape, lambda b, _s=len(shape): (0,) * _s)
    c_last, t_last = layer_cfgs[-1][0], layer_cfgs[-1][1]
    return pl.pallas_call(
        kern,
        out_shape=jax.ShapeDtypeStruct((n, c_last, t_last), x.dtype),
        grid=(n,),
        in_specs=([pl.BlockSpec((1, c0, t0), lambda b: (b, 0, 0))]
                  + [full(s.shape) for s in sel_mats]
                  + [full(w.shape) for w in w_flats]
                  + [full(bias_pack.shape)]),
        out_specs=pl.BlockSpec((1, c_last, t_last), lambda b: (b, 0, 0)),
        compiler_params=pltpu.CompilerParams(
            dimension_semantics=("parallel",)),               # batch over v7x's 2 TCs
    )(x, *sel_mats, *w_flats, bias_pack)


def _reference_forward(params, x, channels, kernel_size=7):
    """Pure-JAX (XLA) reference of the PyTorch AudioDecoder forward (eval mode)."""
    pad = (kernel_size - 1) // 2
    n_layers = len(channels) - 1
    h = x
    for i in range(n_layers):
        w, b = params[i]
        if i < n_layers - 1:
            h = jnp.repeat(h, 2, axis=-1)                     # Upsample(scale=2, nearest)
        else:
            idx = (jnp.arange(25) * h.shape[-1]) // 25        # Upsample(size=25, nearest)
            h = jnp.take(h, idx, axis=-1)
        t_out = h.shape[-1]
        hp = jnp.pad(h, ((0, 0), (0, 0), (pad, pad)), mode="reflect")
        out = b[None, :, None]
        out = out + sum(jnp.einsum("oc,nct->not", w[:, :, k], hp[:, :, k:k + t_out])
                        for k in range(kernel_size))
        if i < n_layers - 1:
            out = jnp.where(out > 0, out, 0.2 * out)          # LeakyReLU(0.2)
        h = out
    return h


def init_audio_decoder_params(key, channels, kernel_size=7):
    """Deterministic PyTorch-Conv1d-style uniform init for every conv layer."""
    params = []
    n_convs = len(channels) - 1
    keys = jax.random.split(key, 2 * n_convs)
    for i in range(n_convs):
        c_in, c_out = channels[i], channels[i + 1]
        bound = 1.0 / (c_in * kernel_size) ** 0.5
        w = jax.random.uniform(keys[2 * i], (c_out, c_in, kernel_size),
                               minval=-bound, maxval=bound, dtype=jnp.float32)
        b = jax.random.uniform(keys[2 * i + 1], (c_out,),
                               minval=-bound, maxval=bound, dtype=jnp.float32)
        params.append((w, b))
    return params


if __name__ == "__main__":
    channels = (32, 16, 8, 4)
    kernel_size = 7
    key = jax.random.PRNGKey(0)
    k_param, k_x = jax.random.split(key)

    params = init_audio_decoder_params(k_param, channels, kernel_size)
    x = jax.random.normal(k_x, (2, channels[0], 8), dtype=jnp.float32)   # (N, C, T)

    out = audio_decoder_forward(params, x, channels, kernel_size)
    out = jax.block_until_ready(out)
    assert out.shape == (2, channels[-1], 25), out.shape

    ref = _reference_forward(params, x, channels, kernel_size)
    np.testing.assert_allclose(np.asarray(out), np.asarray(ref), atol=3e-2, rtol=3e-2)
    print("KERNEL_OK")
</pallas_src>

<mosaic_0001>
module attributes {stable_mosaic.version = 11 : i64} {
  func.func @_decoder_kernel(%arg0: i32, %arg1: memref<1x32x8xf32, #tpu.memory_space<vmem>>, %arg2: memref<8x23xbf16, #tpu.memory_space<vmem>>, %arg3: memref<16x39xbf16, #tpu.memory_space<vmem>>, %arg4: memref<32x32xbf16, #tpu.memory_space<vmem>>, %arg5: memref<16x256xbf16, #tpu.memory_space<vmem>>, %arg6: memref<8x128xbf16, #tpu.memory_space<vmem>>, %arg7: memref<4x64xbf16, #tpu.memory_space<vmem>>, %arg8: memref<16x3xf32, #tpu.memory_space<vmem>>, %arg9: memref<1x4x25xf32, #tpu.memory_space<vmem>>) attributes {dimension_semantics = [#tpu.dimension_semantics<parallel>], iteration_bounds = array<i64: 2>, scalar_prefetch = 0 : i64, scratch_operands = 0 : i64, tpu.core_type = #tpu.core_type<tc>, window_params = [{transform_indices = @transform_0, window_bounds = array<i64: 1, 32, 8>}, {pipeline_mode = #tpu.pipeline_mode<synchronous>, transform_indices = @transform_1, window_bounds = array<i64: 8, 23>}, {pipeline_mode = #tpu.pipeline_mode<synchronous>, transform_indices = @transform_2, window_bounds = array<i64: 16, 39>}, {pipeline_mode = #tpu.pipeline_mode<synchronous>, transform_indices = @transform_3, window_bounds = array<i64: 32, 32>}, {pipeline_mode = #tpu.pipeline_mode<synchronous>, transform_indices = @transform_4, window_bounds = array<i64: 16, 256>}, {pipeline_mode = #tpu.pipeline_mode<synchronous>, transform_indices = @transform_5, window_bounds = array<i64: 8, 128>}, {pipeline_mode = #tpu.pipeline_mode<synchronous>, transform_indices = @transform_6, window_bounds = array<i64: 4, 64>}, {pipeline_mode = #tpu.pipeline_mode<synchronous>, transform_indices = @transform_7, window_bounds = array<i64: 16, 3>}, {transform_indices = @transform_8, window_bounds = array<i64: 1, 4, 25>}]} {
    %c0 = arith.constant 0 : index
    %c0_0 = arith.constant 0 : index
    %c0_1 = arith.constant 0 : index
    %0 = vector.load %arg1[%c0, %c0_0, %c0_1] : memref<1x32x8xf32, #tpu.memory_space<vmem>>, vector<1x32x8xf32>
    %1 = vector.shape_cast %0 : vector<1x32x8xf32> to vector<32x8xf32>
    %2 = arith.truncf %1 : vector<32x8xf32> to vector<32x8xbf16>
    %c0_2 = arith.constant 0 : index
    %c0_3 = arith.constant 0 : index
    %3 = vector.load %arg2[%c0_2, %c0_3] : memref<8x23xbf16, #tpu.memory_space<vmem>>, vector<8x23xbf16>
    %cst = arith.constant dense<0.000000e+00> : vector<32x23xf32>
    %4 = tpu.matmul %2, %3, %cst {dimension_numbers = #tpu.dot_dimension_numbers<[1], [0], [0], [1], [0, 0, 1, 1], [], []>} : vector<32x8xbf16>, vector<8x23xbf16>, vector<32x23xf32> -> vector<32x23xf32>
    %5 = vector.extract_strided_slice %4 {offsets = [0, 0], sizes = [32, 16], strides = [1, 1]} : vector<32x23xf32> to vector<32x16xf32>
    %6 = vector.extract_strided_slice %4 {offsets = [0, 1], sizes = [32, 16], strides = [1, 1]} : vector<32x23xf32> to vector<32x16xf32>
    %7 = vector.extract_strided_slice %4 {offsets = [0, 2], sizes = [32, 16], strides = [1, 1]} : vector<32x23xf32> to vector<32x16xf32>
    %8 = vector.extract_strided_slice %4 {offsets = [0, 3], sizes = [32, 16], strides = [1, 1]} : vector<32x23xf32> to vector<32x16xf32>
    %9 = vector.extract_strided_slice %4 {offsets = [0, 4], sizes = [32, 16], strides = [1, 1]} : vector<32x23xf32> to vector<32x16xf32>
    %10 = vector.extract_strided_slice %4 {offsets = [0, 5], sizes = [32, 16], strides = [1, 1]} : vector<32x23xf32> to vector<32x16xf32>
    %11 = vector.extract_strided_slice %4 {offsets = [0, 6], sizes = [32, 16], strides = [1, 1]} : vector<32x23xf32> to vector<32x16xf32>
    %12 = vector.extract_strided_slice %4 {offsets = [0, 7], sizes = [32, 16], strides = [1, 1]} : vector<32x23xf32> to vector<32x16xf32>
    %13 = tpu.concatenate %5, %6, %7, %8, %9, %10, %11, %12 in 0 : vector<32x16xf32>, vector<32x16xf32>, vector<32x16xf32>, vector<32x16xf32>, vector<32x16xf32>, vector<32x16xf32>, vector<32x16xf32>, vector<32x16xf32> -> vector<256x16xf32>
    %c0_4 = arith.constant 0 : index
    %c0_5 = arith.constant 0 : index
    %14 = vector.load %arg5[%c0_4, %c0_5] : memref<16x256xbf16, #tpu.memory_space<vmem>>, vector<16x256xbf16>
    %15 = arith.truncf %13 : vector<256x16xf32> to vector<256x16xbf16>
    %cst_6 = arith.constant dense<0.000000e+00> : vector<16x16xf32>
    %16 = tpu.matmul %14, %15, %cst_6 {dimension_numbers = #tpu.dot_dimension_numbers<[1], [0], [0], [1], [0, 0, 1, 1], [], []>} : vector<16x256xbf16>, vector<256x16xbf16>, vector<16x16xf32> -> vector<16x16xf32>
    %c0_7 = arith.constant 0 : index
    %c0_8 = arith.constant 0 : index
    %17 = vector.load %arg8[%c0_7, %c0_8] : memref<16x3xf32, #tpu.memory_space<vmem>>, vector<16x1xf32>
    %18 = vector.broadcast %17 : vector<16x1xf32> to vector<16x16xf32>
    %19 = arith.addf %16, %18 : vector<16x16xf32>
    %cst_9 = arith.constant 0.000000e+00 : f32
    %20 = vector.broadcast %cst_9 : f32 to vector<16x16xf32>
    %21 = arith.cmpf ogt, %19, %20 : vector<16x16xf32>
    %cst_10 = arith.constant 2.000000e-01 : f32
    %22 = vector.broadcast %cst_10 : f32 to vector<16x16xf32>
    %23 = arith.mulf %22, %19 : vector<16x16xf32>
    %24 = arith.select %21, %19, %23 : vector<16x16xi1>, vector<16x16xf32>
    %25 = arith.truncf %24 : vector<16x16xf32> to vector<16x16xbf16>
    %c0_11 = arith.constant 0 : index
    %c0_12 = arith.constant 0 : index
    %26 = vector.load %arg3[%c0_11, %c0_12] : memref<16x39xbf16, #tpu.memory_space<vmem>>, vector<16x39xbf16>
    %cst_13 = arith.constant dense<0.000000e+00> : vector<16x39xf32>
    %27 = tpu.matmul %25, %26, %cst_13 {dimension_numbers = #tpu.dot_dimension_numbers<[1], [0], [0], [1], [0, 0, 1, 1], [], []>} : vector<16x16xbf16>, vector<16x39xbf16>, vector<16x39xf32> -> vector<16x39xf32>
    %28 = vector.extract_strided_slice %27 {offsets = [0, 0], sizes = [16, 32], strides = [1, 1]} : vector<16x39xf32> to vector<16x32xf32>
    %29 = vector.extract_strided_slice %27 {offsets = [0, 1], sizes = [16, 32], strides = [1, 1]} : vector<16x39xf32> to vector<16x32xf32>
    %30 = vector.extract_strided_slice %27 {offsets = [0, 2], sizes = [16, 32], strides = [1, 1]} : vector<16x39xf32> to vector<16x32xf32>
    %31 = vector.extract_strided_slice %27 {offsets = [0, 3], sizes = [16, 32], strides = [1, 1]} : vector<16x39xf32> to vector<16x32xf32>
    %32 = vector.extract_strided_slice %27 {offsets = [0, 4], sizes = [16, 32], strides = [1, 1]} : vector<16x39xf32> to vector<16x32xf32>
    %33 = vector.extract_strided_slice %27 {offsets = [0, 5], sizes = [16, 32], strides = [1, 1]} : vector<16x39xf32> to vector<16x32xf32>
    %34 = vector.extract_strided_slice %27 {offsets = [0, 6], sizes = [16, 32], strides = [1, 1]} : vector<16x39xf32> to vector<16x32xf32>
    %35 = vector.extract_strided_slice %27 {offsets = [0, 7], sizes = [16, 32], strides = [1, 1]} : vector<16x39xf32> to vector<16x32xf32>
    %36 = tpu.concatenate %28, %29, %30, %31, %32, %33, %34, %35 in 0 : vector<16x32xf32>, vector<16x32xf32>, vector<16x32xf32>, vector<16x32xf32>, vector<16x32xf32>, vector<16x32xf32>, vector<16x32xf32>, vector<16x32xf32> -> vector<128x32xf32>
    %c0_14 = arith.constant 0 : index
    %c0_15 = arith.constant 0 : index
    %37 = vector.load %arg6[%c0_14, %c0_15] : memref<8x128xbf16, #tpu.memory_space<vmem>>, vector<8x128xbf16>
    %38 = arith.truncf %36 : vector<128x32xf32> to vector<128x32xbf16>
    %cst_16 = arith.constant dense<0.000000e+00> : vector<8x32xf32>
    %39 = tpu.matmul %37, %38, %cst_16 {dimension_numbers = #tpu.dot_dimension_numbers<[1], [0], [0], [1], [0, 0, 1, 1], [], []>} : vector<8x128xbf16>, vector<128x32xbf16>, vector<8x32xf32> -> vector<8x32xf32>
    %c0_17 = arith.constant 0 : index
    %c1 = arith.constant 1 : index
    %40 = vector.load %arg8[%c0_17, %c1] : memref<16x3xf32, #tpu.memory_space<vmem>>, vector<8x1xf32>
    %41 = vector.broadcast %40 : vector<8x1xf32> to vector<8x32xf32>
    %42 = arith.addf %39, %41 : vector<8x32xf32>
    %cst_18 = arith.constant 0.000000e+00 : f32
    %43 = vector.broadcast %cst_18 : f32 to vector<8x32xf32>
    %44 = arith.cmpf ogt, %42, %43 : vector<8x32xf32>
    %cst_19 = arith.constant 2.000000e-01 : f32
    %45 = vector.broadcast %cst_19 : f32 to vector<8x32xf32>
    %46 = arith.mulf %45, %42 : vector<8x32xf32>
    %47 = arith.select %44, %42, %46 : vector<8x32xi1>, vector<8x32xf32>
    %48 = arith.truncf %47 : vector<8x32xf32> to vector<8x32xbf16>
    %c0_20 = arith.constant 0 : index
    %c0_21 = arith.constant 0 : index
    %49 = vector.load %arg4[%c0_20, %c0_21] : memref<32x32xbf16, #tpu.memory_space<vmem>>, vector<32x32xbf16>
    %cst_22 = arith.constant dense<0.000000e+00> : vector<8x32xf32>
    %50 = tpu.matmul %48, %49, %cst_22 {dimension_numbers = #tpu.dot_dimension_numbers<[1], [0], [0], [1], [0, 0, 1, 1], [], []>} : vector<8x32xbf16>, vector<32x32xbf16>, vector<8x32xf32> -> vector<8x32xf32>
    %51 = vector.extract_strided_slice %50 {offsets = [0, 0], sizes = [8, 25], strides = [1, 1]} : vector<8x32xf32> to vector<8x25xf32>
    %52 = vector.extract_strided_slice %50 {offsets = [0, 1], sizes = [8, 25], strides = [1, 1]} : vector<8x32xf32> to vector<8x25xf32>
    %53 = vector.extract_strided_slice %50 {offsets = [0, 2], sizes = [8, 25], strides = [1, 1]} : vector<8x32xf32> to vector<8x25xf32>
    %54 = vector.extract_strided_slice %50 {offsets = [0, 3], sizes = [8, 25], strides = [1, 1]} : vector<8x32xf32> to vector<8x25xf32>
    %55 = vector.extract_strided_slice %50 {offsets = [0, 4], sizes = [8, 25], strides = [1, 1]} : vector<8x32xf32> to vector<8x25xf32>
    %56 = vector.extract_strided_slice %50 {offsets = [0, 5], sizes = [8, 25], strides = [1, 1]} : vector<8x32xf32> to vector<8x25xf32>
    %57 = vector.extract_strided_slice %50 {offsets = [0, 6], sizes = [8, 25], strides = [1, 1]} : vector<8x32xf32> to vector<8x25xf32>
    %58 = vector.extract_strided_slice %50 {offsets = [0, 7], sizes = [8, 25], strides = [1, 1]} : vector<8x32xf32> to vector<8x25xf32>
    %59 = tpu.concatenate %51, %52, %53, %54, %55, %56, %57, %58 in 0 : vector<8x25xf32>, vector<8x25xf32>, vector<8x25xf32>, vector<8x25xf32>, vector<8x25xf32>, vector<8x25xf32>, vector<8x25xf32>, vector<8x25xf32> -> vector<64x25xf32>
    %c0_23 = arith.constant 0 : index
    %c0_24 = arith.constant 0 : index
    %60 = vector.load %arg7[%c0_23, %c0_24] : memref<4x64xbf16, #tpu.memory_space<vmem>>, vector<4x64xbf16>
    %61 = arith.truncf %59 : vector<64x25xf32> to vector<64x25xbf16>
    %cst_25 = arith.constant dense<0.000000e+00> : vector<4x25xf32>
    %62 = tpu.matmul %60, %61, %cst_25 {dimension_numbers = #tpu.dot_dimension_numbers<[1], [0], [0], [1], [0, 0, 1, 1], [], []>} : vector<4x64xbf16>, vector<64x25xbf16>, vector<4x25xf32> -> vector<4x25xf32>
    %c0_26 = arith.constant 0 : index
    %c2 = arith.constant 2 : index
    %63 = vector.load %arg8[%c0_26, %c2] : memref<16x3xf32, #tpu.memory_space<vmem>>, vector<4x1xf32>
    %64 = vector.broadcast %63 : vector<4x1xf32> to vector<4x25xf32>
    %65 = arith.addf %62, %64 : vector<4x25xf32>
    %c0_27 = arith.constant 0 : index
    %c0_28 = arith.constant 0 : index
    %c0_29 = arith.constant 0 : index
    %66 = vector.load %arg9[%c0_27, %c0_28, %c0_29] : memref<1x4x25xf32, #tpu.memory_space<vmem>>, vector<1x4x25xf32>
    %67 = vector.shape_cast %66 : vector<1x4x25xf32> to vector<4x25xf32>
    %68 = vector.shape_cast %65 : vector<4x25xf32> to vector<1x4x25xf32>
    tpu.vector_store %arg9[%c0_27, %c0_28, %c0_29], %68 {strides = array<i32>} : memref<1x4x25xf32, #tpu.memory_space<vmem>>, vector<1x4x25xf32>,
    return
  }
  func.func @transform_0(%arg0: i32) -> (i32, i32, i32) {
    %c0_i32 = arith.constant 0 : i32
    %c0_i32_0 = arith.constant 0 : i32
    %c0_i32_1 = arith.constant 0 : i32
    return %arg0, %c0_i32, %c0_i32_0 : i32, i32, i32
  }
  func.func @transform_1(%arg0: i32) -> (i32, i32) {
    %c0_i32 = arith.constant 0 : i32
    %c0_i32_0 = arith.constant 0 : i32
    %c0_i32_1 = arith.constant 0 : i32
    return %c0_i32, %c0_i32_0 : i32, i32
  }
  func.func @transform_2(%arg0: i32) -> (i32, i32) {
    %c0_i32 = arith.constant 0 : i32
    %c0_i32_0 = arith.constant 0 : i32
    %c0_i32_1 = arith.constant 0 : i32
    return %c0_i32, %c0_i32_0 : i32, i32
  }
  func.func @transform_3(%arg0: i32) -> (i32, i32) {
    %c0_i32 = arith.constant 0 : i32
    %c0_i32_0 = arith.constant 0 : i32
    %c0_i32_1 = arith.constant 0 : i32
    return %c0_i32, %c0_i32_0 : i32, i32
  }
  func.func @transform_4(%arg0: i32) -> (i32, i32) {
    %c0_i32 = arith.constant 0 : i32
    %c0_i32_0 = arith.constant 0 : i32
    %c0_i32_1 = arith.constant 0 : i32
    return %c0_i32, %c0_i32_0 : i32, i32
  }
  func.func @transform_5(%arg0: i32) -> (i32, i32) {
    %c0_i32 = arith.constant 0 : i32
    %c0_i32_0 = arith.constant 0 : i32
    %c0_i32_1 = arith.constant 0 : i32
    return %c0_i32, %c0_i32_0 : i32, i32
  }
  func.func @transform_6(%arg0: i32) -> (i32, i32) {
    %c0_i32 = arith.constant 0 : i32
    %c0_i32_0 = arith.constant 0 : i32
    %c0_i32_1 = arith.constant 0 : i32
    return %c0_i32, %c0_i32_0 : i32, i32
  }
  func.func @transform_7(%arg0: i32) -> (i32, i32) {
    %c0_i32 = arith.constant 0 : i32
    %c0_i32_0 = arith.constant 0 : i32
    %c0_i32_1 = arith.constant 0 : i32
    return %c0_i32, %c0_i32_0 : i32, i32
  }
  func.func @transform_8(%arg0: i32) -> (i32, i32, i32) {
    %c0_i32 = arith.constant 0 : i32
    %c0_i32_0 = arith.constant 0 : i32
    %c0_i32_1 = arith.constant 0 : i32
    return %arg0, %c0_i32, %c0_i32_0 : i32, i32, i32
  }
}

</mosaic_0001>

<llo_original>
// kernel: audio_decoder_forward.1
$region0: #{audio_decoder_forward.1}
  #allocation0 [shape = 'u32[]', space=smem, size = 0x4, offset = 0x4, fixed_abs, tag = 'smem constant byte address 0x4 - core index']
  #allocation1 [shape = 'u32[144,128]{1,0:T(1,128)}', space=vmem, size = 0x12000, scoped, tag = 'internal scratch']
  %s0 = inlined_call_operand.vmem [shape: f32[2,32,8], index: 0, kind: input, shape index: {}]
  %s1 = inlined_call_operand.vmem [shape: bf16[8,23], index: 1, kind: input, shape index: {}]
  %s2 = inlined_call_operand.vmem [shape: bf16[16,39], index: 2, kind: input, shape index: {}]
  %s3 = inlined_call_operand.vmem [shape: bf16[32,32], index: 3, kind: input, shape index: {}]
  %s4 = inlined_call_operand.vmem [shape: bf16[16,256], index: 4, kind: input, shape index: {}]
  %s5 = inlined_call_operand.vmem [shape: bf16[8,128], index: 5, kind: input, shape index: {}]
  %s6 = inlined_call_operand.vmem [shape: bf16[4,64], index: 6, kind: input, shape index: {}]
  %s7 = inlined_call_operand.vmem [shape: f32[16,3], index: 7, kind: input, shape index: {}]
  %s8 = inlined_call_operand.hbm [shape: f32[2,4,25], index: 8, kind: output, shape index: {}]
  %s9 = sld [smem:[#allocation0]]
  $region65: #{audio_decoder_forward.1} parent=0
    _
  %s11 = ssub.s32 1, %s9
  %s12 = scalar_select 0, %s11, %s9
  $region1: #{audio_decoder_forward.1} parent=0
    #allocation2 [shape = 'u8[4096]{0}', space=vmem, size = 0x1000, scoped, tag = 'output window, operand 0']
    #allocation3 [shape = 's32[2]{0}', space=sflag, size = 0x8, scoped, tag = 'scoped memory for audio_decoder_forward.1']
    %13 = vsyncpa [#allocation3], 0
    %s14 = scalar_lea.sflag [#allocation3], 1
    %15 = vsyncpa %s14, 0
    loop: start=0, step=1, limit=4
    $region2: #{audio_decoder_forward.1} parent=1 // loop_pre_header
      _
    $region3: #{audio_decoder_forward.1} parent=1 // loop_header
      %s17 = sphi 0, %s21
      %p18 = scmp.ge.s32.totalorder %s17, 4
      %s27 = sphi 0, %s29
      %s30 = sphi 0, %s27
      %s31 = sphi 0, %s30
      %s47 = sphi 0, %s31
      %s51 = sphi 0, %s51
      %s53 = sphi 0, %s51
      %s54 = sphi 0, %s53
      %s68 = sphi 0, %s54
      %s72 = sphi 0, %s72
      %s74 = sphi 0, %s72
      %s75 = sphi 0, %s74
      %s89 = sphi 0, %s75
      %s93 = sphi 0, %s93
      %s95 = sphi 0, %s93
      %s96 = sphi 0, %s95
      %s110 = sphi 0, %s96
      %s114 = sphi 0, %s114
      %s116 = sphi 0, %s114
      %s117 = sphi 0, %s116
      %s131 = sphi 0, %s117
      %s135 = sphi 0, %s135
      %s137 = sphi 0, %s135
      %s138 = sphi 0, %s137
      %s152 = sphi 0, %s138
      %s156 = sphi 0, %s156
      %s158 = sphi 0, %s156
      %s159 = sphi 0, %s158
      %s173 = sphi 0, %s159
      %s177 = sphi 0, %s177
      %s179 = sphi 0, %s177
      %s180 = sphi 0, %s179
      %s194 = sphi 0, %s180
      %s200 = sphi 0, %s202
      %s203 = sphi 0, %s200
      %s204 = sphi 0, %s203
      %s220 = sphi 0, %s204
    $region4: #{audio_decoder_forward.1} parent=1 // loop_header_branch
      %20 = sbr.rel (%p18) target = $region8
    $region5: #{audio_decoder_forward.1} parent=1 // loop_body
      %s22 = ssub.s32 %s17, 1
      %s23 = ssub.s32 %s17, 2
      %s24 = sadd.s32 %s17, 1
      %s25 = ssub.s32 %s17, %s24
      %p26 = scmp.eq.s32.totalorder %s25, 0
      %s28 = sadd.s32 %s27, 1
      %s29 = scalar_select %p26, %s27, %s28
      %p32 = pneg %p26
      %p33 = scmp.eq.s32.totalorder %s17, 1
      %p34 = por %p32, %p33
      %p35 = scmp.ne.s32.totalorder %s27, %s30
      %p36 = scmp.eq.s32.totalorder %s17, 0
      %p37 = por %p35, %p36
      %p38 = scmp.ne.s32.totalorder %s27, %s30
      %p39 = scmp.eq.s32.totalorder %s22, 1
      %p40 = por %p38, %p39
      %p41 = scmp.ne.s32.totalorder %s30, %s31
      %p42 = scmp.eq.s32.totalorder %s22, 0
      %p43 = por %p41, %p42
      %p44 = scmp.ne.s32.totalorder %s30, %s31
      %p45 = scmp.eq.s32.totalorder %s23, 1
      %p46 = por %p44, %p45
      %p48 = scmp.ne.s32.totalorder %s31, %s47
      %p49 = scmp.eq.s32.totalorder %s23, 0
      %p50 = por %p48, %p49
      %s52 = sadd.s32 %s51, 1
      %p55 = scmp.eq.s32.totalorder %s17, 1
      %p56 = scmp.ne.s32.totalorder %s51, %s53
      %p57 = scmp.eq.s32.totalorder %s17, 0
      %p58 = por %p56, %p57
      %p59 = scmp.ne.s32.totalorder %s51, %s53
      %p60 = scmp.eq.s32.totalorder %s22, 1
      %p61 = por %p59, %p60
      %p62 = scmp.ne.s32.totalorder %s53, %s54
      %p63 = scmp.eq.s32.totalorder %s22, 0
      %p64 = por %p62, %p63
      %p65 = scmp.ne.s32.totalorder %s53, %s54
      %p66 = scmp.eq.s32.totalorder %s23, 1
      %p67 = por %p65, %p66
      %p69 = scmp.ne.s32.totalorder %s54, %s68
      %p70 = scmp.eq.s32.totalorder %s23, 0
      %p71 = por %p69, %p70
      %s73 = sadd.s32 %s72, 1
      %p76 = scmp.eq.s32.totalorder %s17, 1
      %p77 = scmp.ne.s32.totalorder %s72, %s74
      %p78 = scmp.eq.s32.totalorder %s17, 0
      %p79 = por %p77, %p78
      %p80 = scmp.ne.s32.totalorder %s72, %s74
      %p81 = scmp.eq.s32.totalorder %s22, 1
      %p82 = por %p80, %p81
      %p83 = scmp.ne.s32.totalorder %s74, %s75
      %p84 = scmp.eq.s32.totalorder %s22, 0
      %p85 = por %p83, %p84
      %p86 = scmp.ne.s32.totalorder %s74, %s75
      %p87 = scmp.eq.s32.totalorder %s23, 1
      %p88 = por %p86, %p87
      %p90 = scmp.ne.s32.totalorder %s75, %s89
      %p91 = scmp.eq.s32.totalorder %s23, 0
      %p92 = por %p90, %p91
      %s94 = sadd.s32 %s93, 1
      %p97 = scmp.eq.s32.totalorder %s17, 1
      %p98 = scmp.ne.s32.totalorder %s93, %s95
      %p99 = scmp.eq.s32.totalorder %s17, 0
      %p100 = por %p98, %p99
      %p101 = scmp.ne.s32.totalorder %s93, %s95
      %p102 = scmp.eq.s32.totalorder %s22, 1
      %p103 = por %p101, %p102
      %p104 = scmp.ne.s32.totalorder %s95, %s96
      %p105 = scmp.eq.s32.totalorder %s22, 0
      %p106 = por %p104, %p105
      %p107 = scmp.ne.s32.totalorder %s95, %s96
      %p108 = scmp.eq.s32.totalorder %s23, 1
      %p109 = por %p107, %p108
      %p111 = scmp.ne.s32.totalorder %s96, %s110
      %p112 = scmp.eq.s32.totalorder %s23, 0
      %p113 = por %p111, %p112
      %s115 = sadd.s32 %s114, 1
      %p118 = scmp.eq.s32.totalorder %s17, 1
      %p119 = scmp.ne.s32.totalorder %s114, %s116
      %p120 = scmp.eq.s32.totalorder %s17, 0
      %p121 = por %p119, %p120
      %p122 = scmp.ne.s32.totalorder %s114, %s116
      %p123 = scmp.eq.s32.totalorder %s22, 1
      %p124 = por %p122, %p123
      %p125 = scmp.ne.s32.totalorder %s116, %s117
      %p126 = scmp.eq.s32.totalorder %s22, 0
      %p127 = por %p125, %p126
      %p128 = scmp.ne.s32.totalorder %s116, %s117
      %p129 = scmp.eq.s32.totalorder %s23, 1
      %p130 = por %p128, %p129
      %p132 = scmp.ne.s32.totalorder %s117, %s131
      %p133 = scmp.eq.s32.totalorder %s23, 0
      %p134 = por %p132, %p133
      %s136 = sadd.s32 %s135, 1
      %p139 = scmp.eq.s32.totalorder %s17, 1
      %p140 = scmp.ne.s32.totalorder %s135, %s137
      %p141 = scmp.eq.s32.totalorder %s17, 0
      %p142 = por %p140, %p141
      %p143 = scmp.ne.s32.totalorder %s135, %s137
      %p144 = scmp.eq.s32.totalorder %s22, 1
      %p145 = por %p143, %p144
      %p146 = scmp.ne.s32.totalorder %s137, %s138
      %p147 = scmp.eq.s32.totalorder %s22, 0
      %p148 = por %p146, %p147
      %p149 = scmp.ne.s32.totalorder %s137, %s138
      %p150 = scmp.eq.s32.totalorder %s23, 1
      %p151 = por %p149, %p150
      %p153 = scmp.ne.s32.totalorder %s138, %s152
      %p154 = scmp.eq.s32.totalorder %s23, 0
      %p155 = por %p153, %p154
      %s157 = sadd.s32 %s156, 1
      %p160 = scmp.eq.s32.totalorder %s17, 1
      %p161 = scmp.ne.s32.totalorder %s156, %s158
      %p162 = scmp.eq.s32.totalorder %s17, 0
      %p163 = por %p161, %p162
      %p164 = scmp.ne.s32.totalorder %s156, %s158
      %p165 = scmp.eq.s32.totalorder %s22, 1
      %p166 = por %p164, %p165
      %p167 = scmp.ne.s32.totalorder %s158, %s159
      %p168 = scmp.eq.s32.totalorder %s22, 0
      %p169 = por %p167, %p168
      %p170 = scmp.ne.s32.totalorder %s158, %s159
      %p171 = scmp.eq.s32.totalorder %s23, 1
      %p172 = por %p170, %p171
      %p174 = scmp.ne.s32.totalorder %s159, %s173
      %p175 = scmp.eq.s32.totalorder %s23, 0
      %p176 = por %p174, %p175
      %s178 = sadd.s32 %s177, 1
      %p181 = scmp.eq.s32.totalorder %s17, 1
      %p182 = scmp.ne.s32.totalorder %s177, %s179
      %p183 = scmp.eq.s32.totalorder %s17, 0
      %p184 = por %p182, %p183
      %p185 = scmp.ne.s32.totalorder %s177, %s179
      %p186 = scmp.eq.s32.totalorder %s22, 1
      %p187 = por %p185, %p186
      %p188 = scmp.ne.s32.totalorder %s179, %s180
      %p189 = scmp.eq.s32.totalorder %s22, 0
      %p190 = por %p188, %p189
      %p191 = scmp.ne.s32.totalorder %s179, %s180
      %p192 = scmp.eq.s32.totalorder %s23, 1
      %p193 = por %p191, %p192
      %p195 = scmp.ne.s32.totalorder %s180, %s194
      %p196 = scmp.eq.s32.totalorder %s23, 0
      %p197 = por %p195, %p196
      %s198 = ssub.s32 %s17, %s24
      %p199 = scmp.eq.s32.totalorder %s198, 0
      %s201 = sadd.s32 %s200, 1
      %s202 = scalar_select %p199, %s200, %s201
      %p205 = pneg %p199
      %p206 = scmp.eq.s32.totalorder %s17, 1
      %p207 = por %p205, %p206
      %p208 = scmp.ne.s32.totalorder %s200, %s203
      %p209 = scmp.eq.s32.totalorder %s17, 0
      %p210 = por %p208, %p209
      %p211 = scmp.ne.s32.totalorder %s200, %s203
      %p212 = scmp.eq.s32.totalorder %s22, 1
      %p213 = por %p211, %p212
      %p214 = scmp.ne.s32.totalorder %s203, %s204
      %p215 = scmp.eq.s32.totalorder %s22, 0
      %p216 = por %p214, %p215
      %p217 = scmp.ne.s32.totalorder %s203, %s204
      %p218 = scmp.eq.s32.totalorder %s23, 1
      %p219 = por %p217, %p218
      %p221 = scmp.ne.s32.totalorder %s204, %s220
      %p222 = scmp.eq.s32.totalorder %s23, 0
      %p223 = por %p221, %p222
      %p224 = scmp.le.s32.totalorder 1, %s17
      %p225 = scmp.lt.s32.totalorder %s17, 3
      %p226 = pnand %p224, %p225
      %p227 = pneg %p226
      // Predicated region
      $region9: #{audio_decoder_forward.1} parent=5 // pred_check
        _
      $region10: #{audio_decoder_forward.1} parent=5 // pred_check_branch
        %229 = sbr.rel (%p226) target = $region12
      $region11: #{audio_decoder_forward.1} parent=5 // pred_region
        %s230 = ssub.s32 %s17, 1
        // Predicated region
        $region13: #{audio_decoder_forward.1} parent=11 // pred_check
          %p231 = pneg %p64
        $region14: #{audio_decoder_forward.1} parent=11 // pred_check_branch
          %233 = sbr.rel (%p231) target = $region16
        $region15: #{audio_decoder_forward.1} parent=11 // pred_region
          _
        $region16: #{audio_decoder_forward.1} parent=11 // pred_fallthru
          _
        // Predicated region
        $region17: #{audio_decoder_forward.1} parent=11 // pred_check
          %p234 = pneg %p85
        $region18: #{audio_decoder_forward.1} parent=11 // pred_check_branch
          %236 = sbr.rel (%p234) target = $region20
        $region19: #{audio_decoder_forward.1} parent=11 // pred_region
          _
        $region20: #{audio_decoder_forward.1} parent=11 // pred_fallthru
          _
        // Predicated region
        $region21: #{audio_decoder_forward.1} parent=11 // pred_check
          %p237 = pneg %p106
        $region22: #{audio_decoder_forward.1} parent=11 // pred_check_branch
          %239 = sbr.rel (%p237) target = $region24
        $region23: #{audio_decoder_forward.1} parent=11 // pred_region
          _
        $region24: #{audio_decoder_forward.1} parent=11 // pred_fallthru
          _
        // Predicated region
        $region25: #{audio_decoder_forward.1} parent=11 // pred_check
          %p240 = pneg %p127
        $region26: #{audio_decoder_forward.1} parent=11 // pred_check_branch
          %242 = sbr.rel (%p240) target = $region28
        $region27: #{audio_decoder_forward.1} parent=11 // pred_region
          _
        $region28: #{audio_decoder_forward.1} parent=11 // pred_fallthru
          _
        // Predicated region
        $region29: #{audio_decoder_forward.1} parent=11 // pred_check
          %p243 = pneg %p148
        $region30: #{audio_decoder_forward.1} parent=11 // pred_check_branch
          %245 = sbr.rel (%p243) target = $region32
        $region31: #{audio_decoder_forward.1} parent=11 // pred_region
          _
        $region32: #{audio_decoder_forward.1} parent=11 // pred_fallthru
          _
        // Predicated region
        $region33: #{audio_decoder_forward.1} parent=11 // pred_check
          %p246 = pneg %p169
        $region34: #{audio_decoder_forward.1} parent=11 // pred_check_branch
          %248 = sbr.rel (%p246) target = $region36
        $region35: #{audio_decoder_forward.1} parent=11 // pred_region
          _
        $region36: #{audio_decoder_forward.1} parent=11 // pred_fallthru
          _
        // Predicated region
        $region37: #{audio_decoder_forward.1} parent=11 // pred_check
          %p249 = pneg %p190
        $region38: #{audio_decoder_forward.1} parent=11 // pred_check_branch
          %251 = sbr.rel (%p249) target = $region40
        $region39: #{audio_decoder_forward.1} parent=11 // pred_region
          _
        $region40: #{audio_decoder_forward.1} parent=11 // pred_fallthru
          _
      $region12: #{audio_decoder_forward.1} parent=5 // pred_fallthru
        _
      %p252 = scmp.lt.s32.totalorder %s17, 2
      // Predicated region
      $region41: #{audio_decoder_forward.1} parent=5 // pred_check
        %p253 = pneg %p252
      $region42: #{audio_decoder_forward.1} parent=5 // pred_check_branch
        %255 = sbr.rel (%p253) target = $region44
      $region43: #{audio_decoder_forward.1} parent=5 // pred_region
        // Predicated region
        $region45: #{audio_decoder_forward.1} parent=43 // pred_check
          %p256 = pneg %p37
        $region46: #{audio_decoder_forward.1} parent=43 // pred_check_branch
          %258 = sbr.rel (%p256) target = $region48
        $region47: #{audio_decoder_forward.1} parent=43 // pred_region
          %p259 = scmp.lt.s32.totalorder %s17, 1
          %s260 = scalar_select %p259, %s17, 1
          %s261 = smul.addr %s260, 4
          %s262 = smul.addr %s261, 8
          %s263 = scalar_lea.vmem %s0, %s262
        $region48: #{audio_decoder_forward.1} parent=43 // pred_fallthru
          _
      $region44: #{audio_decoder_forward.1} parent=5 // pred_fallthru
        _
      %p264 = scmp.le.s32.totalorder 1, %s17
      %p265 = scmp.lt.s32.totalorder %s17, 3
      %p266 = pnand %p264, %p265
      %p267 = pneg %p266
      // Predicated region
      $region49: #{audio_decoder_forward.1} parent=5 // pred_check
        _
      $region50: #{audio_decoder_forward.1} parent=5 // pred_check_branch
        %269 = sbr.rel (%p266) target = $region52
      $region51: #{audio_decoder_forward.1} parent=5 // pred_region
        %s270 = ssub.s32 %s17, 1
        %p271 = scmp.lt.s32.totalorder %s22, 1
        %s272 = scalar_select %p271, %s22, 1
        %s273 = smul.addr %s272, 4
        %s274 = smul.addr %s273, 8
        %s275 = scalar_lea.vmem %s0, %s274
        %p276 = pneg %p43
        %p277 = pneg %p40
        %p278 = pneg %p64
        %p279 = pneg %p61
        %p280 = pneg %p85
        %p281 = pneg %p82
        %p282 = pneg %p106
        %p283 = pneg %p103
        %p284 = pneg %p127
        %p285 = pneg %p124
        %p286 = pneg %p148
        %p287 = pneg %p145
        %p288 = pneg %p169
        %p289 = pneg %p166
        %p290 = pneg %p190
        %p291 = pneg %p187
        %p292 = pneg %p216
        %p293 = pneg %p213
        %s294 = sand.u32 %s203, 1
        %s295 = scalar_lea.sflag [#allocation3], %s294
        %s296 = sand.u32 %s203, 1
        %s297 = smul.addr %s296, 4
        %s298 = scalar_lea.vmem [#allocation2], %s297
        %p299 = scmp.lt.s32.totalorder %s22, 1
        %s300 = scalar_select %p299, %s22, 1
        %s301 = smul.addr %s300, 4
        %s302 = smul.addr %s301, 8
        %s303 = scalar_lea.vmem %s0, %s302
        %v305 = vld [vmem:[%s303] sm:$0xff]
        %v306 = vld [vmem:[%s303 + $0x8] sm:$0xff]
        %v307 = vld [vmem:[%s303 + $0x10] sm:$0xff]
        %v308 = vld [vmem:[%s303 + $0x18] sm:$0xff]
        %v309 = vpack.c.bf16 %v306, %v305
        %v310 = vpack.c.bf16 %v308, %v307
        %v311 = vld [vmem:[%s1] sm:$0xf]
        %vm312 = vcmask 64512
        %v314 = vsel %vm312, %v309, 0
        %v317 = vsel %vm312, %v310, 0
        %vm319 = vcmask 1043456
        %v321 = vsel %vm319, %v311, 0
        %323 = vmatprep.subr.bf16.mxu0 0
        %324 = vmatpush1.bf16.msra.mxu0 0
        %325 = vmatprep.subr.bf16.mxu0 0
        %326 = vmatpush1.bf16.msra.mxu0 0
        %327 = vmatprep.subr.bf16.mxu0 0
        %328 = vmatpush1.bf16.msra.mxu0 0
        %329 = vmatprep.subr.bf16.mxu0 0
        %330 = vmatpush1.bf16.msra.mxu0 0
        %331 = vmatprep.subr.bf16.mxu0 0
        %332 = vmatpush1.bf16.msra.mxu0 0
        %333 = vmatprep.subr.bf16.mxu0 0
        %334 = vmatpush1.bf16.msra.mxu0 0
        %335 = vmatprep.subr.bf16.mxu0 0
        %336 = vmatpush1.bf16.msra.mxu0 0
        %337 = vmatprep.subr.bf16.mxu0 0
        %338 = vmatpush1.bf16.msra.mxu0 %v321
        %339 = vmatprep.subr.bf16.mxu0 0
        %340 = vmatpush2.bf16.msra.mxu0 0
        %341 = vmatprep.subr.bf16.mxu0 0
        %342 = vmatpush2.bf16.msra.mxu0 0
        %343 = vmatprep.subr.bf16.mxu0 0
        %344 = vmatpush2.bf16.msra.mxu0 0
        %345 = vmatprep.subr.bf16.mxu0 0
        %346 = vmatpush2.bf16.msra.mxu0 0
        %347 = vmatprep.subr.bf16.mxu0 0
        %348 = vmatpush2.bf16.msra.mxu0 0
        %349 = vmatprep.subr.bf16.mxu0 0
        %350 = vmatpush2.bf16.msra.mxu0 0
        %351 = vmatprep.subr.bf16.mxu0 0
        %352 = vmatpush2.bf16.msra.mxu0 0
        %353 = vmatprep.subr.bf16.mxu0 0
        %354 = vmatpush2.bf16.msra.mxu0 0
        %355 = vmatprep.mubr.bf16.mxu0 0
        %356 = vmatmul.mubr.bf16.gmra.mxu0 %v314
        %v357 = vpop.f32.mrf.mxu0
        %v358 = vadd.f32 0.0, %v357
        %v359 = vpop.f32.mrf.mxu0
        %v360 = vpop.f32.mrf.mxu0
        %v361 = vadd.f32 0.0, %v360
        %v362 = vpop.f32.mrf.mxu0
        %363 = vmatprep.mubr.bf16.mxu0 0
        %364 = vmatmul.mubr.bf16.gmra.mxu0 %v317
        %v365 = vpop.f32.mrf.mxu0
        %v366 = vadd.f32 0.0, %v365
        %v367 = vpop.f32.mrf.mxu0
        %v368 = vpop.f32.mrf.mxu0
        %v369 = vadd.f32 0.0, %v368
        %v370 = vpop.f32.mrf.mxu0
        %371 = vdwg.mxu0
        %376 = vrot.lane.b32.xlu0 %v358, 127
        %v377 = vpop.permute.xlu0 %376
        %378 = vrot.lane.b32.xlu0 %v361, 127
        %v379 = vpop.permute.xlu0 %378
        %380 = vrot.lane.b32.xlu0 %v366, 127
        %v381 = vpop.permute.xlu0 %380
        %382 = vrot.lane.b32.xlu0 %v369, 127
        %v383 = vpop.permute.xlu0 %382
        %388 = vrot.lane.b32.xlu0 %v358, 126
        %v389 = vpop.permute.xlu0 %388
        %390 = vrot.lane.b32.xlu0 %v361, 126
        %v391 = vpop.permute.xlu0 %390
        %392 = vrot.lane.b32.xlu0 %v366, 126
        %v393 = vpop.permute.xlu0 %392
        %394 = vrot.lane.b32.xlu0 %v369, 126
        %v395 = vpop.permute.xlu0 %394
        %400 = vrot.lane.b32.xlu0 %v358, 125
        %v401 = vpop.permute.xlu0 %400
        %402 = vrot.lane.b32.xlu0 %v361, 125
        %v403 = vpop.permute.xlu0 %402
        %404 = vrot.lane.b32.xlu0 %v366, 125
        %v405 = vpop.permute.xlu0 %404
        %406 = vrot.lane.b32.xlu0 %v369, 125
        %v407 = vpop.permute.xlu0 %406
        %412 = vrot.lane.b32.xlu0 %v358, 124
        %v413 = vpop.permute.xlu0 %412
        %414 = vrot.lane.b32.xlu0 %v361, 124
        %v415 = vpop.permute.xlu0 %414
        %416 = vrot.lane.b32.xlu0 %v366, 124
        %v417 = vpop.permute.xlu0 %416
        %418 = vrot.lane.b32.xlu0 %v369, 124
        %v419 = vpop.permute.xlu0 %418
        %424 = vrot.lane.b32.xlu0 %v358, 123
        %v425 = vpop.permute.xlu0 %424
        %426 = vrot.lane.b32.xlu0 %v361, 123
        %v427 = vpop.permute.xlu0 %426
        %428 = vrot.lane.b32.xlu0 %v366, 123
        %v429 = vpop.permute.xlu0 %428
        %430 = vrot.lane.b32.xlu0 %v369, 123
        %v431 = vpop.permute.xlu0 %430
        %436 = vrot.lane.b32.xlu0 %v358, 122
        %v437 = vpop.permute.xlu0 %436
        %438 = vrot.lane.b32.xlu0 %v361, 122
        %v439 = vpop.permute.xlu0 %438
        %440 = vrot.lane.b32.xlu0 %v366, 122
        %v441 = vpop.permute.xlu0 %440
        %442 = vrot.lane.b32.xlu0 %v369, 122
        %v443 = vpop.permute.xlu0 %442
        %448 = vrot.lane.b32.xlu0 %v358, 121
        %v449 = vpop.permute.xlu0 %448
        %450 = vrot.lane.b32.xlu0 %v361, 121
        %v451 = vpop.permute.xlu0 %450
        %452 = vrot.lane.b32.xlu0 %v366, 121
        %v453 = vpop.permute.xlu0 %452
        %454 = vrot.lane.b32.xlu0 %v369, 121
        %v455 = vpop.permute.xlu0 %454
        %v460 = vld [vmem:[%s4] sm:$0xff]
        %v461 = vld [vmem:[%s4 + $0x8] sm:$0xff]
        %v462 = vpack.c.bf16 %v361, %v358
        %v463 = vpack.c.bf16 %v369, %v366
        %v464 = vpack.c.bf16 %v379, %v377
        %v465 = vpack.c.bf16 %v383, %v381
        %v466 = vpack.c.bf16 %v391, %v389
        %v467 = vpack.c.bf16 %v395, %v393
        %v468 = vpack.c.bf16 %v403, %v401
        %v469 = vpack.c.bf16 %v407, %v405
        %v470 = vpack.c.bf16 %v415, %v413
        %v471 = vpack.c.bf16 %v419, %v417
        %v472 = vpack.c.bf16 %v427, %v425
        %v473 = vpack.c.bf16 %v431, %v429
        %v474 = vpack.c.bf16 %v439, %v437
        %v475 = vpack.c.bf16 %v443, %v441
        %v476 = vpack.c.bf16 %v451, %v449
        %v477 = vpack.c.bf16 %v455, %v453
        %v478 = vld [vmem:[%s7] sm:$0xff]
        %v479 = vld [vmem:[%s7 + $0x8] sm:$0xff]
        %481 = vset.pattern.permute.xlu0 0
        %482 = vperm.xlu0 %481, %v478
        %v483 = vpop.permute.xlu0 %482
        %486 = vset.pattern.permute.xlu0 0
        %487 = vperm.xlu0 %486, %v479
        %v488 = vpop.permute.xlu0 %487
        %v492 = vunpack.c.l.b16 %v460
        %v493 = vunpack.c.h.b16 %v460
        %v494 = vunpack.c.l.b16 %v461
        %v495 = vunpack.c.h.b16 %v461
        %v496 = vpack.c.b16 %v494, %v492
        %v497 = vpack.c.b16 %v495, %v493
        %500 = vmatprep.subr.bf16.mxu0 0
        %501 = vmatpush1.bf16.msra.mxu0 %v469
        %502 = vmatprep.subr.bf16.mxu0 0
        %503 = vmatpush1.bf16.msra.mxu0 %v468
        %504 = vmatprep.subr.bf16.mxu0 0
        %505 = vmatpush1.bf16.msra.mxu0 %v467
        %506 = vmatprep.subr.bf16.mxu0 0
        %507 = vmatpush1.bf16.msra.mxu0 %v466
        %508 = vmatprep.subr.bf16.mxu0 0
        %509 = vmatpush1.bf16.msra.mxu0 %v465
        %510 = vmatprep.subr.bf16.mxu0 0
        %511 = vmatpush1.bf16.msra.mxu0 %v464
        %512 = vmatprep.subr.bf16.mxu0 0
        %513 = vmatpush1.bf16.msra.mxu0 %v463
        %514 = vmatprep.subr.bf16.mxu0 0
        %515 = vmatpush1.bf16.msra.mxu0 %v462
        %516 = vmatprep.subr.bf16.mxu0 0
        %517 = vmatpush2.bf16.msra.mxu0 %v477
        %518 = vmatprep.subr.bf16.mxu0 0
        %519 = vmatpush2.bf16.msra.mxu0 %v476
        %520 = vmatprep.subr.bf16.mxu0 0
        %521 = vmatpush2.bf16.msra.mxu0 %v475
        %522 = vmatprep.subr.bf16.mxu0 0
        %523 = vmatpush2.bf16.msra.mxu0 %v474
        %524 = vmatprep.subr.bf16.mxu0 0
        %525 = vmatpush2.bf16.msra.mxu0 %v473
        %526 = vmatprep.subr.bf16.mxu0 0
        %527 = vmatpush2.bf16.msra.mxu0 %v472
        %528 = vmatprep.subr.bf16.mxu0 0
        %529 = vmatpush2.bf16.msra.mxu0 %v471
        %530 = vmatprep.subr.bf16.mxu0 0
        %531 = vmatpush2.bf16.msra.mxu0 %v470
        %532 = vmatprep.mubr.bf16.mxu0 %v497
        %533 = vmatmul.mubr.bf16.gmra.mxu0 %v496
        %v534 = vpop.f32.mrf.mxu0
        %v535 = vadd.f32 %v483, %v534
        %v536 = vpop.f32.mrf.mxu0
        %v537 = vpop.f32.mrf.mxu0
        %v538 = vadd.f32 %v488, %v537
        %v539 = vpop.f32.mrf.mxu0
        %540 = vdwg.mxu0
        %vm541 = vcmp.gt.f32.partialorder %v535, 0.0
        %vm542 = vcmp.gt.f32.partialorder %v538, 0.0
        %v543 = vmul.f32 %v535, 0.2
        %v544 = vmul.f32 %v538, 0.2
        %v545 = vsel %vm541, %v535, %v543
        %v546 = vsel %vm542, %v538, %v544
        %v547 = vpack.c.bf16 %v546, %v545
        %v548 = vld [vmem:[%s2] sm:$0xf]
        %v549 = vld [vmem:[%s2 + $0x4] sm:$0xf]
        %v552 = vunpack.c.l.b16 %v548
        %v553 = vunpack.c.l.b16 %v549
        %v554 = vpack.c.b16 %v553, %v552
        %vm556 = vcmask 130048
        %v558 = vsel %vm556, %v547, 0
        %560 = vmatprep.subr.bf16.mxu0 0
        %561 = vmatpush1.bf16.msra.mxu0 0
        %562 = vmatprep.subr.bf16.mxu0 0
        %563 = vmatpush1.bf16.msra.mxu0 0
        %564 = vmatprep.subr.bf16.mxu0 0
        %565 = vmatpush1.bf16.msra.mxu0 0
        %566 = vmatprep.subr.bf16.mxu0 0
        %567 = vmatpush1.bf16.msra.mxu0 0
        %568 = vmatprep.subr.bf16.mxu0 0
        %569 = vmatpush1.bf16.msra.mxu0 0
        %570 = vmatprep.subr.bf16.mxu0 0
        %571 = vmatpush1.bf16.msra.mxu0 0
        %572 = vmatprep.subr.bf16.mxu0 0
        %573 = vmatpush1.bf16.msra.mxu0 0
        %574 = vmatprep.subr.bf16.mxu0 0
        %575 = vmatpush1.bf16.msra.mxu0 %v554
        %576 = vmatprep.subr.bf16.mxu0 0
        %577 = vmatpush2.bf16.msra.mxu0 0
        %578 = vmatprep.subr.bf16.mxu0 0
        %579 = vmatpush2.bf16.msra.mxu0 0
        %580 = vmatprep.subr.bf16.mxu0 0
        %581 = vmatpush2.bf16.msra.mxu0 0
        %582 = vmatprep.subr.bf16.mxu0 0
        %583 = vmatpush2.bf16.msra.mxu0 0
        %584 = vmatprep.subr.bf16.mxu0 0
        %585 = vmatpush2.bf16.msra.mxu0 0
        %586 = vmatprep.subr.bf16.mxu0 0
        %587 = vmatpush2.bf16.msra.mxu0 0
        %588 = vmatprep.subr.bf16.mxu0 0
        %589 = vmatpush2.bf16.msra.mxu0 0
        %590 = vmatprep.subr.bf16.mxu0 0
        %591 = vmatpush2.bf16.msra.mxu0 0
        %592 = vmatprep.mubr.bf16.mxu0 0
        %593 = vmatmul.mubr.bf16.gmra.mxu0 %v558
        %v594 = vpop.f32.mrf.mxu0
        %v595 = vadd.f32 0.0, %v594
        %v596 = vpop.f32.mrf.mxu0
        %v597 = vpop.f32.mrf.mxu0
        %v598 = vadd.f32 0.0, %v597
        %v599 = vpop.f32.mrf.mxu0
        %600 = vdwg.mxu0
        %603 = vrot.lane.b32.xlu0 %v595, 127
        %v604 = vpop.permute.xlu0 %603
        %605 = vrot.lane.b32.xlu0 %v598, 127
        %v606 = vpop.permute.xlu0 %605
        %609 = vrot.lane.b32.xlu0 %v595, 126
        %v610 = vpop.permute.xlu0 %609
        %611 = vrot.lane.b32.xlu0 %v598, 126
        %v612 = vpop.permute.xlu0 %611
        %615 = vrot.lane.b32.xlu0 %v595, 125
        %v616 = vpop.permute.xlu0 %615
        %617 = vrot.lane.b32.xlu0 %v598, 125
        %v618 = vpop.permute.xlu0 %617
        %621 = vrot.lane.b32.xlu0 %v595, 124
        %v622 = vpop.permute.xlu0 %621
        %623 = vrot.lane.b32.xlu0 %v598, 124
        %v624 = vpop.permute.xlu0 %623
        %627 = vrot.lane.b32.xlu0 %v595, 123
        %v628 = vpop.permute.xlu0 %627
        %629 = vrot.lane.b32.xlu0 %v598, 123
        %v630 = vpop.permute.xlu0 %629
        %633 = vrot.lane.b32.xlu0 %v595, 122
        %v634 = vpop.permute.xlu0 %633
        %635 = vrot.lane.b32.xlu0 %v598, 122
        %v636 = vpop.permute.xlu0 %635
        %639 = vrot.lane.b32.xlu0 %v595, 121
        %v640 = vpop.permute.xlu0 %639
        %641 = vrot.lane.b32.xlu0 %v598, 121
        %v642 = vpop.permute.xlu0 %641
        %v645 = vld [vmem:[%s5] sm:$0xf]
        %v646 = vpack.c.bf16 %v598, %v595
        %v647 = vpack.c.bf16 %v606, %v604
        %v648 = vpack.c.bf16 %v612, %v610
        %v649 = vpack.c.bf16 %v618, %v616
        %v650 = vpack.c.bf16 %v624, %v622
        %v651 = vpack.c.bf16 %v630, %v628
        %v652 = vpack.c.bf16 %v636, %v634
        %v653 = vpack.c.bf16 %v642, %v640
        %v654 = vld [vmem:[%s7] sm:$0xff]
        %656 = vset.pattern.permute.xlu0 1
        %657 = vperm.xlu0 %656, %v654
        %v658 = vpop.permute.xlu0 %657
        %660 = vmatprep.subr.bf16.mxu0 0
        %661 = vmatpush1.bf16.msra.mxu0 %v653
        %662 = vmatprep.subr.bf16.mxu0 0
        %663 = vmatpush1.bf16.msra.mxu0 %v652
        %664 = vmatprep.subr.bf16.mxu0 0
        %665 = vmatpush1.bf16.msra.mxu0 %v651
        %666 = vmatprep.subr.bf16.mxu0 0
        %667 = vmatpush1.bf16.msra.mxu0 %v650
        %668 = vmatprep.subr.bf16.mxu0 0
        %669 = vmatpush1.bf16.msra.mxu0 %v649
        %670 = vmatprep.subr.bf16.mxu0 0
        %671 = vmatpush1.bf16.msra.mxu0 %v648
        %672 = vmatprep.subr.bf16.mxu0 0
        %673 = vmatpush1.bf16.msra.mxu0 %v647
        %674 = vmatprep.subr.bf16.mxu0 0
        %675 = vmatpush1.bf16.msra.mxu0 %v646
        %676 = vmatprep.subr.bf16.mxu0 0
        %677 = vmatpush2.bf16.msra.mxu0 0
        %678 = vmatprep.subr.bf16.mxu0 0
        %679 = vmatpush2.bf16.msra.mxu0 0
        %680 = vmatprep.subr.bf16.mxu0 0
        %681 = vmatpush2.bf16.msra.mxu0 0
        %682 = vmatprep.subr.bf16.mxu0 0
        %683 = vmatpush2.bf16.msra.mxu0 0
        %684 = vmatprep.subr.bf16.mxu0 0
        %685 = vmatpush2.bf16.msra.mxu0 0
        %686 = vmatprep.subr.bf16.mxu0 0
        %687 = vmatpush2.bf16.msra.mxu0 0
        %688 = vmatprep.subr.bf16.mxu0 0
        %689 = vmatpush2.bf16.msra.mxu0 0
        %690 = vmatprep.subr.bf16.mxu0 0
        %691 = vmatpush2.bf16.msra.mxu0 0
        %692 = vmatprep.mubr.bf16.mxu0 0
        %693 = vmatmul.mubr.bf16.gmra.mxu0 %v645
        %v694 = vpop.f32.mrf.mxu0
        %v695 = vadd.f32 %v658, %v694
        %v696 = vpop.f32.mrf.mxu0
        %v697 = vpop.f32.mrf.mxu0
        %v698 = vpop.f32.mrf.mxu0
        %699 = vdwg.mxu0
        %vm700 = vcmp.gt.f32.partialorder %v695, 0.0
        %v701 = vmul.f32 %v695, 0.2
        %v702 = vsel %vm700, %v695, %v701
        %v703 = vpack.c.bf16 %v702, %v702
        %v704 = vld [vmem:[%s3] sm:$0xf]
        %v705 = vld [vmem:[%s3 + $0x4] sm:$0xf]
        %v706 = vld [vmem:[%s3 + $0x8] sm:$0xf]
        %v707 = vld [vmem:[%s3 + $0xc] sm:$0xf]
        %v712 = vunpack.c.l.b16 %v704
        %v713 = vunpack.c.l.b16 %v705
        %v714 = vunpack.c.l.b16 %v706
        %v715 = vunpack.c.l.b16 %v707
        %v716 = vpack.c.b16 %v713, %v712
        %v717 = vpack.c.b16 %v715, %v714
        %vm720 = vcmask 261120
        %v722 = vsel %vm720, %v703, 0
        %724 = vmatprep.subr.bf16.mxu0 0
        %725 = vmatpush1.bf16.msra.mxu0 0
        %726 = vmatprep.subr.bf16.mxu0 0
        %727 = vmatpush1.bf16.msra.mxu0 0
        %728 = vmatprep.subr.bf16.mxu0 0
        %729 = vmatpush1.bf16.msra.mxu0 0
        %730 = vmatprep.subr.bf16.mxu0 0
        %731 = vmatpush1.bf16.msra.mxu0 0
        %732 = vmatprep.subr.bf16.mxu0 0
        %733 = vmatpush1.bf16.msra.mxu0 0
        %734 = vmatprep.subr.bf16.mxu0 0
        %735 = vmatpush1.bf16.msra.mxu0 0
        %736 = vmatprep.subr.bf16.mxu0 0
        %737 = vmatpush1.bf16.msra.mxu0 %v717
        %738 = vmatprep.subr.bf16.mxu0 0
        %739 = vmatpush1.bf16.msra.mxu0 %v716
        %740 = vmatprep.subr.bf16.mxu0 0
        %741 = vmatpush2.bf16.msra.mxu0 0
        %742 = vmatprep.subr.bf16.mxu0 0
        %743 = vmatpush2.bf16.msra.mxu0 0
        %744 = vmatprep.subr.bf16.mxu0 0
        %745 = vmatpush2.bf16.msra.mxu0 0
        %746 = vmatprep.subr.bf16.mxu0 0
        %747 = vmatpush2.bf16.msra.mxu0 0
        %748 = vmatprep.subr.bf16.mxu0 0
        %749 = vmatpush2.bf16.msra.mxu0 0
        %750 = vmatprep.subr.bf16.mxu0 0
        %751 = vmatpush2.bf16.msra.mxu0 0
        %752 = vmatprep.subr.bf16.mxu0 0
        %753 = vmatpush2.bf16.msra.mxu0 0
        %754 = vmatprep.subr.bf16.mxu0 0
        %755 = vmatpush2.bf16.msra.mxu0 0
        %756 = vmatprep.mubr.bf16.mxu0 0
        %757 = vmatmul.mubr.bf16.gmra.mxu0 %v722
        %v758 = vpop.f32.mrf.mxu0
        %v759 = vadd.f32 0.0, %v758
        %v760 = vpop.f32.mrf.mxu0
        %v761 = vpop.f32.mrf.mxu0
        %v762 = vpop.f32.mrf.mxu0
        %763 = vdwg.mxu0
        %765 = vrot.lane.b32.xlu0 %v759, 127
        %v766 = vpop.permute.xlu0 %765
        %768 = vrot.lane.b32.xlu0 %v759, 126
        %v769 = vpop.permute.xlu0 %768
        %771 = vrot.lane.b32.xlu0 %v759, 125
        %v772 = vpop.permute.xlu0 %771
        %774 = vrot.lane.b32.xlu0 %v759, 124
        %v775 = vpop.permute.xlu0 %774
        %777 = vrot.lane.b32.xlu0 %v759, 123
        %v778 = vpop.permute.xlu0 %777
        %780 = vrot.lane.b32.xlu0 %v759, 122
        %v781 = vpop.permute.xlu0 %780
        %783 = vrot.lane.b32.xlu0 %v759, 121
        %v784 = vpop.permute.xlu0 %783
        %v786 = vld [vmem:[%s6] sm:$0x3]
        %v787 = vpack.c.bf16 %v766, %v759
        %v788 = vpack.c.bf16 %v772, %v769
        %v789 = vpack.c.bf16 %v778, %v775
        %v790 = vpack.c.bf16 %v784, %v781
        %v791 = vld [vmem:[%s7] sm:$0xf]
        %793 = vset.pattern.permute.xlu0 2
        %794 = vperm.xlu0 %793, %v791
        %v795 = vpop.permute.xlu0 %794
        %vm797 = vcmask 523264
        %v799 = vsel %vm797, %v786, 0
        %801 = vmatprep.subr.bf16.mxu0 0
        %802 = vmatpush1.bf16.msra.mxu0 0
        %803 = vmatprep.subr.bf16.mxu0 0
        %804 = vmatpush1.bf16.msra.mxu0 0
        %805 = vmatprep.subr.bf16.mxu0 0
        %806 = vmatpush1.bf16.msra.mxu0 0
        %807 = vmatprep.subr.bf16.mxu0 0
        %808 = vmatpush1.bf16.msra.mxu0 0
        %809 = vmatprep.subr.bf16.mxu0 0
        %810 = vmatpush1.bf16.msra.mxu0 %v790
        %811 = vmatprep.subr.bf16.mxu0 0
        %812 = vmatpush1.bf16.msra.mxu0 %v789
        %813 = vmatprep.subr.bf16.mxu0 0
        %814 = vmatpush1.bf16.msra.mxu0 %v788
        %815 = vmatprep.subr.bf16.mxu0 0
        %816 = vmatpush1.bf16.msra.mxu0 %v787
        %817 = vmatprep.subr.bf16.mxu0 0
        %818 = vmatpush2.bf16.msra.mxu0 0
        %819 = vmatprep.subr.bf16.mxu0 0
        %820 = vmatpush2.bf16.msra.mxu0 0
        %821 = vmatprep.subr.bf16.mxu0 0
        %822 = vmatpush2.bf16.msra.mxu0 0
        %823 = vmatprep.subr.bf16.mxu0 0
        %824 = vmatpush2.bf16.msra.mxu0 0
        %825 = vmatprep.subr.bf16.mxu0 0
        %826 = vmatpush2.bf16.msra.mxu0 0
        %827 = vmatprep.subr.bf16.mxu0 0
        %828 = vmatpush2.bf16.msra.mxu0 0
        %829 = vmatprep.subr.bf16.mxu0 0
        %830 = vmatpush2.bf16.msra.mxu0 0
        %831 = vmatprep.subr.bf16.mxu0 0
        %832 = vmatpush2.bf16.msra.mxu0 0
        %833 = vmatprep.mubr.bf16.mxu0 0
        %834 = vmatmul.mubr.bf16.gmra.mxu0 %v799
        %v835 = vpop.f32.mrf.mxu0
        %v836 = vadd.f32 %v795, %v835
        %v837 = vpop.f32.mrf.mxu0
        %v838 = vpop.f32.mrf.mxu0
        %v839 = vpop.f32.mrf.mxu0
        %840 = vdwg.mxu0
        %vm841 = vcmask 199680
        %842 = vst.msk [vmem:[%s298] sm:$0xf] %vm841, %v836
        %s843 = sand.u32 %s203, 1
        %s844 = scalar_lea.sflag [#allocation3], %s843
        %s845 = sand.u32 %s203, 1
        %s846 = smul.addr %s845, 4
        %s847 = scalar_lea.vmem [#allocation2], %s846
        // Predicated region
        $region53: #{audio_decoder_forward.1} parent=51 // pred_check
          %p848 = pneg %p213
        $region54: #{audio_decoder_forward.1} parent=51 // pred_check_branch
          %850 = sbr.rel (%p848) target = $region56
        $region55: #{audio_decoder_forward.1} parent=51 // pred_region
          %s852 = ssub.s32 64, 64
          %853 = vsyncadd %s844, %s852
          %s854 = smul.addr %s22, 64
          %s855 = scalar_lea.hbm %s8, %s854
          %s857 = sshll.u32 %s847, 4
          %s858 = int_to_ptr.vmem [resolvable:$true] %s857
          %860 = dma.vmem_to_hbm [thread:$0]  %s858, 64, %s855, %s844
        $region56: #{audio_decoder_forward.1} parent=51 // pred_fallthru
          _
      $region52: #{audio_decoder_forward.1} parent=5 // pred_fallthru
        _
      %p861 = scmp.le.s32.totalorder 2, %s17
      // Predicated region
      $region57: #{audio_decoder_forward.1} parent=5 // pred_check
        %p862 = pneg %p861
      $region58: #{audio_decoder_forward.1} parent=5 // pred_check_branch
        %864 = sbr.rel (%p862) target = $region60
      $region59: #{audio_decoder_forward.1} parent=5 // pred_region
        %s865 = ssub.s32 %s17, 2
        // Predicated region
        $region61: #{audio_decoder_forward.1} parent=59 // pred_check
          %p866 = pneg %p219
        $region62: #{audio_decoder_forward.1} parent=59 // pred_check_branch
          %868 = sbr.rel (%p866) target = $region64
        $region63: #{audio_decoder_forward.1} parent=59 // pred_region
          %s869 = sand.u32 %s204, 1
          %s870 = scalar_lea.sflag [#allocation3], %s869
          %s871 = sand.u32 %s204, 1
          %s872 = smul.addr %s871, 4
          %s873 = scalar_lea.vmem [#allocation2], %s872
          %874 = dma.done %s870, 64
        $region64: #{audio_decoder_forward.1} parent=59 // pred_fallthru
          _
      $region60: #{audio_decoder_forward.1} parent=5 // pred_fallthru
        _
    $region6: #{audio_decoder_forward.1} parent=1 // loop_footer
      %s21 = sadd.s32 1, %s17
    $region7: #{audio_decoder_forward.1} parent=1 // loop_footer_branch
      %16 = sbr.rel target = $region3
    $region8: #{audio_decoder_forward.1} parent=1 // loop_exit
      _
    %875 = vsyncpa [#allocation3], 1
    %s876 = scalar_lea.sflag [#allocation3], 1
    %877 = vsyncpa %s876, 1

</llo_original>
